<compile_context>
chip_gen: v6e
topology: v6e:2x2x1
jax: 0.10.0
libtpu: 0.0.40
codegen_flags: <defaults>
</compile_context>

<pallas_src>
import jax
import jax.numpy as jnp
import numpy as np
from jax import lax
from jax.experimental import pallas as pl
from jax.experimental.pallas import tpu as pltpu


def _lstm_chunk_kernel(x_ref, wih_ref, whh_ref, b_ref,
                       h_out_ref, c_out_ref,
                       pg_sc, h_sc, c_sc):
    """One grid step = one (batch tile, sequence chunk).

    x_ref:   (S_CHUNK, B_T, Z) bf16 input chunk
    wih_ref: (Z, 4H) bf16, input->gates weights, gate order [i|f|o|g]
    whh_ref: (H, 4H) bf16, hidden->gates weights, gate order [i|f|o|g]
    b_ref:   (1, 4H) f32, b_ih + b_hh, gate order [i|f|o|g]
    h_out_ref/c_out_ref: (1, B_T, H) f32, written only on the last chunk
    pg_sc:   (S_CHUNK*B_T, 4H) bf16 VMEM scratch for hoisted pre-gates
    h_sc/c_sc: (B_T, H) f32 VMEM scratch carrying state across chunks
    """
    s_idx = pl.program_id(1)
    S_CHUNK, B_T, Z = x_ref.shape
    H4 = whh_ref.shape[-1]
    H = H4 // 4

    # ---- init carried state at the first sequence chunk of this batch tile.
    @pl.when(s_idx == 0)
    def _():
        h_sc[...] = jnp.zeros_like(h_sc)
        c_sc[...] = jnp.zeros_like(c_sc)

    # ---- hoisted input projection for this chunk: one big MXU matmul.
    # TODO(synk): make batch_tile a multiple of 16 (bf16 sublane tile) in
    # production so this leading-dim merge is layout-free.
    x2d = x_ref[...].reshape(S_CHUNK * B_T, Z)                     # bf16
    pg_sc[...] = jnp.dot(x2d, wih_ref[...],
                         preferred_element_type=jnp.float32
                         ).astype(pg_sc.dtype)                     # bf16 store

    whh = whh_ref[...]                                             # (H, 4H) bf16
    # Hoist the broadcasts / iota out of the serial loop (not CSE'd otherwise).
    bias = jnp.broadcast_to(b_ref[...], (B_T, H4)).astype(jnp.float32)
    sig_mask = lax.broadcasted_iota(jnp.int32, (B_T, H4), 1) < 3 * H

    # ---- serial recurrence over this chunk: one small dot + fused gates/step.
    def step(t, carry):
        h, c = carry
        row = pl.multiple_of(t * B_T, 8)                           # B_T % 8 == 0
        pre = pg_sc[pl.ds(row, B_T), :].astype(jnp.float32)
        gates = pre + bias + jnp.dot(h.astype(whh.dtype), whh,
                                     preferred_element_type=jnp.float32)
        # One masked pass over the full (B_T, 4H) vreg: sigmoid on lanes [0,3H),
        # tanh on [3H,4H) -- no non-aligned lane slice for the activation split.
        act = jnp.where(sig_mask, jax.nn.sigmoid(gates), jnp.tanh(gates))
        # TODO(synk): for production, pad H to a multiple of 128 so these
        # per-gate lane slices are tile-aligned.
        i_g = act[:, 0 * H:1 * H]
        f_g = act[:, 1 * H:2 * H]
        o_g = act[:, 2 * H:3 * H]
        g_g = act[:, 3 * H:4 * H]
        c_new = f_g * c + i_g * g_g
        h_new = o_g * jnp.tanh(c_new)
        return h_new, c_new

    h_f, c_f = lax.fori_loop(0, S_CHUNK, step, (h_sc[...], c_sc[...]),
                             unroll=min(8, S_CHUNK))
    h_sc[...] = h_f
    c_sc[...] = c_f

    # ---- finalize: emit (h_n, c_n) after the last sequence chunk.
    @pl.when(s_idx == pl.num_programs(1) - 1)
    def _():
        h_out_ref[0] = h_f.astype(h_out_ref.dtype)
        c_out_ref[0] = c_f.astype(c_out_ref.dtype)


def prepare_lstm_params(w_ih, w_hh, b_ih, b_hh):
    """One-time parameter prep (hoisted out of the per-call path):
    gate permute [i,f,g,o] -> [i|f|o|g], transpose, bf16 cast, bias fold."""
    H4 = w_ih.shape[0]
    H = H4 // 4
    perm = jnp.concatenate([
        jnp.arange(0 * H, 1 * H),
        jnp.arange(1 * H, 2 * H),
        jnp.arange(3 * H, 4 * H),
        jnp.arange(2 * H, 3 * H),
    ])
    wih_t = jnp.transpose(w_ih[perm]).astype(jnp.bfloat16)          # (Z, 4H)
    whh_t = jnp.transpose(w_hh[perm]).astype(jnp.bfloat16)          # (H, 4H)
    bias = (b_ih + b_hh)[perm].reshape(1, H4).astype(jnp.float32)   # (1, 4H)
    return wih_t, whh_t, bias


def _vmem_limit_bytes(seq_chunk, batch_tile, Z, H):
    H4 = 4 * H
    bf16_b, f32_b = 2, 4
    x_chunk = seq_chunk * batch_tile * Z * bf16_b
    weights = (Z * H4 + H * H4) * bf16_b + H4 * f32_b
    pg = seq_chunk * batch_tile * H4 * bf16_b
    outs = 2 * batch_tile * H * f32_b
    state = 2 * batch_tile * H * f32_b
    est = 2 * (x_chunk + weights + outs) + pg + state   # double-buffered blocks
    return int(min(128 * 1024 * 1024, max(16 * 1024 * 1024, 2 * est)))


def lstm_encoder_forward(x, params, *, seq_chunk=None, batch_tile=None):
    """Pallas implementation of LSTMEncoder.forward: returns (h_n, c_n),
    each (num_layers=1, B, H), matching nn.LSTM's second output.

    x: (S, B, Z) float32.  params: output of prepare_lstm_params."""
    wih_t, whh_t, bias = params
    S, B, Z = x.shape
    H4 = whh_t.shape[-1]
    H = H4 // 4

    # Batch tiling: sublane-aligned tiles; a leading "parallel" grid axis lets
    # v7x's two TensorCores run independent batch shards of the recurrence.
    if batch_tile is None:
        batch_tile = B if B <= 128 else 128
    batch_tile = max(8, ((batch_tile + 7) // 8) * 8)
    B_pad = ((B + batch_tile - 1) // batch_tile) * batch_tile

    # Sequence chunking: bounded VMEM + pipelined x DMA / hoisted projection.
    if seq_chunk is None:
        seq_chunk = min(S, 64)
    while S % seq_chunk != 0:
        seq_chunk -= 1
    num_b = B_pad // batch_tile
    num_s = S // seq_chunk

    x_bf = x.astype(jnp.bfloat16)
    if B_pad != B:
        x_bf = jnp.pad(x_bf, ((0, 0), (0, B_pad - B), (0, 0)))

    grid_spec = pltpu.PrefetchScalarGridSpec(
        num_scalar_prefetch=0,
        grid=(num_b, num_s),
        in_specs=[
            # TODO(synk): if xprof shows exposed DMA between chunks, add
            # pipeline_mode=pl.Buffered(3) on this x-chunk BlockSpec.
            pl.BlockSpec((seq_chunk, batch_tile, Z), lambda b, s: (s, b, 0)),
            pl.BlockSpec((Z, H4), lambda b, s: (0, 0)),              # W_ih^T
            pl.BlockSpec((H, H4), lambda b, s: (0, 0)),              # W_hh^T
            pl.BlockSpec((1, H4), lambda b, s: (0, 0)),              # bias
        ],
        out_specs=[
            pl.BlockSpec((1, batch_tile, H), lambda b, s: (0, b, 0)),  # h_n
            pl.BlockSpec((1, batch_tile, H), lambda b, s: (0, b, 0)),  # c_n
        ],
        scratch_shapes=[
            pltpu.VMEM((seq_chunk * batch_tile, H4), jnp.bfloat16),  # pre-gates
            pltpu.VMEM((batch_tile, H), jnp.float32),                # h carry
            pltpu.VMEM((batch_tile, H), jnp.float32),                # c carry
        ],
    )

    h_n, c_n = pl.pallas_call(
        _lstm_chunk_kernel,
        grid_spec=grid_spec,
        out_shape=(
            jax.ShapeDtypeStruct((1, B_pad, H), jnp.float32),
            jax.ShapeDtypeStruct((1, B_pad, H), jnp.float32),
        ),
        compiler_params=pltpu.CompilerParams(
            dimension_semantics=("parallel", "arbitrary"),
            vmem_limit_bytes=_vmem_limit_bytes(seq_chunk, batch_tile, Z, H),
        ),
    )(x_bf, wih_t, whh_t, bias)

    if B_pad != B:
        h_n = h_n[:, :B]
        c_n = c_n[:, :B]
    return h_n, c_n


def _lstm_reference(x, w_ih, w_hh, b_ih, b_hh, *, match_kernel_precision=False):
    """Pure-JAX reference (PyTorch nn.LSTM math).  With match_kernel_precision,
    it replicates the kernel's policy: bf16 MXU operands, f32 accumulation,
    bf16-stored pre-gates, f32 bias/gate math."""
    S, B, Z = x.shape
    H = w_hh.shape[1]
    dot_dt = jnp.bfloat16 if match_kernel_precision else jnp.float32
    wih_t = jnp.transpose(w_ih).astype(dot_dt)
    whh_t = jnp.transpose(w_hh).astype(dot_dt)
    b = (b_ih + b_hh).astype(jnp.float32)

    def step(carry, x_t):
        h, c = carry
        pre = jnp.dot(x_t.astype(dot_dt), wih_t,
                      preferred_element_type=jnp.float32)
        if match_kernel_precision:
            pre = pre.astype(jnp.bfloat16).astype(jnp.float32)
        gates = pre + b + jnp.dot(h.astype(dot_dt), whh_t,
                                  preferred_element_type=jnp.float32)
        i = jax.nn.sigmoid(gates[:, 0 * H:1 * H])
        f = jax.nn.sigmoid(gates[:, 1 * H:2 * H])
        g = jnp.tanh(gates[:, 2 * H:3 * H])
        o = jax.nn.sigmoid(gates[:, 3 * H:4 * H])
        c = f * c + i * g
        h = o * jnp.tanh(c)
        return (h, c), None

    h0 = jnp.zeros((B, H), jnp.float32)
    c0 = jnp.zeros((B, H), jnp.float32)
    (h, c), _ = lax.scan(step, (h0, c0), x)
    return h[None], c[None]


if __name__ == "__main__":
    # Small shapes consistent with the module: seq=8, batch=8, input_size=16, hidden=32.
    S, B, Z, H = 8, 8, 16, 32
    key = jax.random.PRNGKey(0)
    kx, k1, k2, k3, k4 = jax.random.split(key, 5)

    x = jax.random.normal(kx, (S, B, Z), dtype=jnp.float32)

    # Deterministic init mimicking PyTorch's uniform(-1/sqrt(H), 1/sqrt(H)).
    bound = 1.0 / np.sqrt(H)
    w_ih = jax.random.uniform(k1, (4 * H, Z), jnp.float32, -bound, bound)
    w_hh = jax.random.uniform(k2, (4 * H, H), jnp.float32, -bound, bound)
    b_ih = jax.random.uniform(k3, (4 * H,), jnp.float32, -bound, bound)
    b_hh = jax.random.uniform(k4, (4 * H,), jnp.float32, -bound, bound)

    # Parameter prep is done once (hoisted out of the forward path).
    params = jax.tree.map(jax.block_until_ready, prepare_lstm_params(w_ih, w_hh, b_ih, b_hh))

    h_n, c_n = lstm_encoder_forward(x, params)
    jax.block_until_ready((h_n, c_n))

    assert h_n.shape == (1, B, H) and c_n.shape == (1, B, H)

    # Matched-precision reference: tight check.
    h_m, c_m = _lstm_reference(x, w_ih, w_hh, b_ih, b_hh, match_kernel_precision=True)
    assert np.allclose(np.asarray(h_n), np.asarray(h_m), atol=2e-4, rtol=2e-3)
    assert np.allclose(np.asarray(c_n), np.asarray(c_m), atol=2e-4, rtol=2e-3)

    # Full-f32 nn.LSTM reference: loose check (bf16 MXU / pre-gate rounding policy).
    h_r, c_r = _lstm_reference(x, w_ih, w_hh, b_ih, b_hh, match_kernel_precision=False)
    assert np.allclose(np.asarray(h_n), np.asarray(h_r), atol=5e-2, rtol=5e-2)
    assert np.allclose(np.asarray(c_n), np.asarray(c_r), atol=5e-2, rtol=5e-2)

    print("KERNEL_OK")
</pallas_src>

<mosaic_0001>
module attributes {stable_mosaic.version = 11 : i64} {
  func.func @_lstm_chunk_kernel(%arg0: i32, %arg1: i32, %arg2: memref<8x8x16xbf16, #tpu.memory_space<vmem>>, %arg3: memref<16x128xbf16, #tpu.memory_space<vmem>>, %arg4: memref<32x128xbf16, #tpu.memory_space<vmem>>, %arg5: memref<1x128xf32, #tpu.memory_space<vmem>>, %arg6: memref<1x8x32xf32, #tpu.memory_space<vmem>>, %arg7: memref<1x8x32xf32, #tpu.memory_space<vmem>>, %arg8: memref<64x128xbf16, #tpu.memory_space<vmem>>, %arg9: memref<8x32xf32, #tpu.memory_space<vmem>>, %arg10: memref<8x32xf32, #tpu.memory_space<vmem>>) attributes {dimension_semantics = [#tpu.dimension_semantics<parallel>, #tpu.dimension_semantics<arbitrary>], iteration_bounds = array<i64: 1, 1>, scalar_prefetch = 0 : i64, scratch_operands = 3 : i64, tpu.core_type = #tpu.core_type<tc>, window_params = [{transform_indices = @transform_0, window_bounds = array<i64: 8, 8, 16>}, {pipeline_mode = #tpu.pipeline_mode<synchronous>, transform_indices = @transform_1, window_bounds = array<i64: 16, 128>}, {pipeline_mode = #tpu.pipeline_mode<synchronous>, transform_indices = @transform_2, window_bounds = array<i64: 32, 128>}, {pipeline_mode = #tpu.pipeline_mode<synchronous>, transform_indices = @transform_3, window_bounds = array<i64: 1, 128>}, {transform_indices = @transform_4, window_bounds = array<i64: 1, 8, 32>}, {transform_indices = @transform_5, window_bounds = array<i64: 1, 8, 32>}]} {
    %c0_i32 = arith.constant 0 : i32
    %0 = arith.cmpi eq, %arg1, %c0_i32 : i32
    %1 = arith.extui %0 : i1 to i32
    %c0_i32_0 = arith.constant 0 : i32
    %2 = arith.cmpi ne, %1, %c0_i32_0 : i32
    scf.if %2 {
      %cst_54 = arith.constant 0.000000e+00 : f32
      %223 = vector.broadcast %cst_54 : f32 to vector<8x32xf32>
      %c0_55 = arith.constant 0 : index
      %c0_56 = arith.constant 0 : index
      %224 = vector.load %arg9[%c0_55, %c0_56] : memref<8x32xf32, #tpu.memory_space<vmem>>, vector<8x32xf32>
      tpu.vector_store %arg9[%c0_55, %c0_56], %223 {strides = array<i32>} : memref<8x32xf32, #tpu.memory_space<vmem>>, vector<8x32xf32>,
      %cst_57 = arith.constant 0.000000e+00 : f32
      %225 = vector.broadcast %cst_57 : f32 to vector<8x32xf32>
      %c0_58 = arith.constant 0 : index
      %c0_59 = arith.constant 0 : index
      %226 = vector.load %arg10[%c0_58, %c0_59] : memref<8x32xf32, #tpu.memory_space<vmem>>, vector<8x32xf32>
      tpu.vector_store %arg10[%c0_58, %c0_59], %225 {strides = array<i32>} : memref<8x32xf32, #tpu.memory_space<vmem>>, vector<8x32xf32>,
    } else {
    }
    %c0 = arith.constant 0 : index
    %c0_1 = arith.constant 0 : index
    %c0_2 = arith.constant 0 : index
    %3 = vector.load %arg2[%c0, %c0_1, %c0_2] : memref<8x8x16xbf16, #tpu.memory_space<vmem>>, vector<8x8x16xbf16>
    %4 = vector.shape_cast %3 : vector<8x8x16xbf16> to vector<64x16xbf16>
    %c0_3 = arith.constant 0 : index
    %c0_4 = arith.constant 0 : index
    %5 = vector.load %arg3[%c0_3, %c0_4] : memref<16x128xbf16, #tpu.memory_space<vmem>>, vector<16x128xbf16>
    %cst = arith.constant dense<0.000000e+00> : vector<64x128xf32>
    %6 = tpu.matmul %4, %5, %cst {dimension_numbers = #tpu.dot_dimension_numbers<[1], [0], [0], [1], [0, 0, 1, 1], [], []>} : vector<64x16xbf16>, vector<16x128xbf16>, vector<64x128xf32> -> vector<64x128xf32>
    %7 = arith.truncf %6 : vector<64x128xf32> to vector<64x128xbf16>
    %c0_5 = arith.constant 0 : index
    %c0_6 = arith.constant 0 : index
    %8 = vector.load %arg8[%c0_5, %c0_6] : memref<64x128xbf16, #tpu.memory_space<vmem>>, vector<64x128xbf16>
    tpu.vector_store %arg8[%c0_5, %c0_6], %7 {strides = array<i32>} : memref<64x128xbf16, #tpu.memory_space<vmem>>, vector<64x128xbf16>,
    %c0_7 = arith.constant 0 : index
    %c0_8 = arith.constant 0 : index
    %9 = vector.load %arg4[%c0_7, %c0_8] : memref<32x128xbf16, #tpu.memory_space<vmem>>, vector<32x128xbf16>
    %c0_9 = arith.constant 0 : index
    %c0_10 = arith.constant 0 : index
    %10 = vector.load %arg5[%c0_9, %c0_10] : memref<1x128xf32, #tpu.memory_space<vmem>>, vector<1x128xf32>
    %11 = vector.shape_cast %10 : vector<1x128xf32> to vector<1x128xf32>
    %12 = vector.broadcast %11 : vector<1x128xf32> to vector<8x128xf32>
    %13 = tpu.iota {dimensions = array<i32: 1>} : vector<8x128xi32>
    %c96_i32 = arith.constant 96 : i32
    %14 = vector.broadcast %c96_i32 : i32 to vector<8x128xi32>
    %15 = arith.cmpi slt, %13, %14 : vector<8x128xi32>
    %c0_11 = arith.constant 0 : index
    %c0_12 = arith.constant 0 : index
    %16 = vector.load %arg9[%c0_11, %c0_12] : memref<8x32xf32, #tpu.memory_space<vmem>>, vector<8x32xf32>
    %c0_13 = arith.constant 0 : index
    %c0_14 = arith.constant 0 : index
    %17 = vector.load %arg10[%c0_13, %c0_14] : memref<8x32xf32, #tpu.memory_space<vmem>>, vector<8x32xf32>
    %c0_i32_15 = arith.constant 0 : i32
    %c8_i32 = arith.constant 8 : i32
    %18 = arith.muli %c0_i32_15, %c8_i32 : i32
    %19 = tpu.assume_multiple %18, 8 : i32
    %20 = arith.index_cast %19 : i32 to index
    %c0_16 = arith.constant 0 : index
    %21 = vector.load %arg8[%20, %c0_16] : memref<64x128xbf16, #tpu.memory_space<vmem>>, vector<8x128xbf16>
    %22 = arith.extf %21 : vector<8x128xbf16> to vector<8x128xf32>
    %23 = arith.addf %22, %12 : vector<8x128xf32>
    %24 = arith.truncf %16 : vector<8x32xf32> to vector<8x32xbf16>
    %cst_17 = arith.constant dense<0.000000e+00> : vector<8x128xf32>
    %25 = tpu.matmul %24, %9, %cst_17 {dimension_numbers = #tpu.dot_dimension_numbers<[1], [0], [0], [1], [0, 0, 1, 1], [], []>} : vector<8x32xbf16>, vector<32x128xbf16>, vector<8x128xf32> -> vector<8x128xf32>
    %26 = arith.addf %23, %25 : vector<8x128xf32>
    %27 = arith.negf %26 : vector<8x128xf32>
    %28 = math.exp %27 : vector<8x128xf32>
    %cst_18 = arith.constant 1.000000e+00 : f32
    %29 = vector.broadcast %cst_18 : f32 to vector<8x128xf32>
    %30 = arith.addf %29, %28 : vector<8x128xf32>
    %31 = arith.divf %29, %30 : vector<8x128xf32>
    %32 = math.tanh %26 : vector<8x128xf32>
    %33 = arith.select %15, %31, %32 : vector<8x128xi1>, vector<8x128xf32>
    %34 = vector.extract_strided_slice %33 {offsets = [0, 0], sizes = [8, 32], strides = [1, 1]} : vector<8x128xf32> to vector<8x32xf32>
    %35 = vector.extract_strided_slice %33 {offsets = [0, 32], sizes = [8, 32], strides = [1, 1]} : vector<8x128xf32> to vector<8x32xf32>
    %36 = vector.extract_strided_slice %33 {offsets = [0, 64], sizes = [8, 32], strides = [1, 1]} : vector<8x128xf32> to vector<8x32xf32>
    %37 = vector.extract_strided_slice %33 {offsets = [0, 96], sizes = [8, 32], strides = [1, 1]} : vector<8x128xf32> to vector<8x32xf32>
    %38 = arith.mulf %35, %17 : vector<8x32xf32>
    %39 = arith.mulf %34, %37 : vector<8x32xf32>
    %40 = arith.addf %38, %39 : vector<8x32xf32>
    %41 = math.tanh %40 : vector<8x32xf32>
    %42 = arith.mulf %36, %41 : vector<8x32xf32>
    %c1_i32 = arith.constant 1 : i32
    %c8_i32_19 = arith.constant 8 : i32
    %43 = arith.muli %c1_i32, %c8_i32_19 : i32
    %44 = tpu.assume_multiple %43, 8 : i32
    %45 = arith.index_cast %44 : i32 to index
    %c0_20 = arith.constant 0 : index
    %46 = vector.load %arg8[%45, %c0_20] : memref<64x128xbf16, #tpu.memory_space<vmem>>, vector<8x128xbf16>
    %47 = arith.extf %46 : vector<8x128xbf16> to vector<8x128xf32>
    %48 = arith.addf %47, %12 : vector<8x128xf32>
    %49 = arith.truncf %42 : vector<8x32xf32> to vector<8x32xbf16>
    %cst_21 = arith.constant dense<0.000000e+00> : vector<8x128xf32>
    %50 = tpu.matmul %49, %9, %cst_21 {dimension_numbers = #tpu.dot_dimension_numbers<[1], [0], [0], [1], [0, 0, 1, 1], [], []>} : vector<8x32xbf16>, vector<32x128xbf16>, vector<8x128xf32> -> vector<8x128xf32>
    %51 = arith.addf %48, %50 : vector<8x128xf32>
    %52 = arith.negf %51 : vector<8x128xf32>
    %53 = math.exp %52 : vector<8x128xf32>
    %cst_22 = arith.constant 1.000000e+00 : f32
    %54 = vector.broadcast %cst_22 : f32 to vector<8x128xf32>
    %55 = arith.addf %54, %53 : vector<8x128xf32>
    %56 = arith.divf %54, %55 : vector<8x128xf32>
    %57 = math.tanh %51 : vector<8x128xf32>
    %58 = arith.select %15, %56, %57 : vector<8x128xi1>, vector<8x128xf32>
    %59 = vector.extract_strided_slice %58 {offsets = [0, 0], sizes = [8, 32], strides = [1, 1]} : vector<8x128xf32> to vector<8x32xf32>
    %60 = vector.extract_strided_slice %58 {offsets = [0, 32], sizes = [8, 32], strides = [1, 1]} : vector<8x128xf32> to vector<8x32xf32>
    %61 = vector.extract_strided_slice %58 {offsets = [0, 64], sizes = [8, 32], strides = [1, 1]} : vector<8x128xf32> to vector<8x32xf32>
    %62 = vector.extract_strided_slice %58 {offsets = [0, 96], sizes = [8, 32], strides = [1, 1]} : vector<8x128xf32> to vector<8x32xf32>
    %63 = arith.mulf %60, %40 : vector<8x32xf32>
    %64 = arith.mulf %59, %62 : vector<8x32xf32>
    %65 = arith.addf %63, %64 : vector<8x32xf32>
    %66 = math.tanh %65 : vector<8x32xf32>
    %67 = arith.mulf %61, %66 : vector<8x32xf32>
    %c2_i32 = arith.constant 2 : i32
    %c8_i32_23 = arith.constant 8 : i32
    %68 = arith.muli %c2_i32, %c8_i32_23 : i32
    %69 = tpu.assume_multiple %68, 8 : i32
    %70 = arith.index_cast %69 : i32 to index
    %c0_24 = arith.constant 0 : index
    %71 = vector.load %arg8[%70, %c0_24] : memref<64x128xbf16, #tpu.memory_space<vmem>>, vector<8x128xbf16>
    %72 = arith.extf %71 : vector<8x128xbf16> to vector<8x128xf32>
    %73 = arith.addf %72, %12 : vector<8x128xf32>
    %74 = arith.truncf %67 : vector<8x32xf32> to vector<8x32xbf16>
    %cst_25 = arith.constant dense<0.000000e+00> : vector<8x128xf32>
    %75 = tpu.matmul %74, %9, %cst_25 {dimension_numbers = #tpu.dot_dimension_numbers<[1], [0], [0], [1], [0, 0, 1, 1], [], []>} : vector<8x32xbf16>, vector<32x128xbf16>, vector<8x128xf32> -> vector<8x128xf32>
    %76 = arith.addf %73, %75 : vector<8x128xf32>
    %77 = arith.negf %76 : vector<8x128xf32>
    %78 = math.exp %77 : vector<8x128xf32>
    %cst_26 = arith.constant 1.000000e+00 : f32
    %79 = vector.broadcast %cst_26 : f32 to vector<8x128xf32>
    %80 = arith.addf %79, %78 : vector<8x128xf32>
    %81 = arith.divf %79, %80 : vector<8x128xf32>
    %82 = math.tanh %76 : vector<8x128xf32>
    %83 = arith.select %15, %81, %82 : vector<8x128xi1>, vector<8x128xf32>
    %84 = vector.extract_strided_slice %83 {offsets = [0, 0], sizes = [8, 32], strides = [1, 1]} : vector<8x128xf32> to vector<8x32xf32>
    %85 = vector.extract_strided_slice %83 {offsets = [0, 32], sizes = [8, 32], strides = [1, 1]} : vector<8x128xf32> to vector<8x32xf32>
    %86 = vector.extract_strided_slice %83 {offsets = [0, 64], sizes = [8, 32], strides = [1, 1]} : vector<8x128xf32> to vector<8x32xf32>
    %87 = vector.extract_strided_slice %83 {offsets = [0, 96], sizes = [8, 32], strides = [1, 1]} : vector<8x128xf32> to vector<8x32xf32>
    %88 = arith.mulf %85, %65 : vector<8x32xf32>
    %89 = arith.mulf %84, %87 : vector<8x32xf32>
    %90 = arith.addf %88, %89 : vector<8x32xf32>
    %91 = math.tanh %90 : vector<8x32xf32>
    %92 = arith.mulf %86, %91 : vector<8x32xf32>
    %c3_i32 = arith.constant 3 : i32
    %c8_i32_27 = arith.constant 8 : i32
    %93 = arith.muli %c3_i32, %c8_i32_27 : i32
    %94 = tpu.assume_multiple %93, 8 : i32
    %95 = arith.index_cast %94 : i32 to index
    %c0_28 = arith.constant 0 : index
    %96 = vector.load %arg8[%95, %c0_28] : memref<64x128xbf16, #tpu.memory_space<vmem>>, vector<8x128xbf16>
    %97 = arith.extf %96 : vector<8x128xbf16> to vector<8x128xf32>
    %98 = arith.addf %97, %12 : vector<8x128xf32>
    %99 = arith.truncf %92 : vector<8x32xf32> to vector<8x32xbf16>
    %cst_29 = arith.constant dense<0.000000e+00> : vector<8x128xf32>
    %100 = tpu.matmul %99, %9, %cst_29 {dimension_numbers = #tpu.dot_dimension_numbers<[1], [0], [0], [1], [0, 0, 1, 1], [], []>} : vector<8x32xbf16>, vector<32x128xbf16>, vector<8x128xf32> -> vector<8x128xf32>
    %101 = arith.addf %98, %100 : vector<8x128xf32>
    %102 = arith.negf %101 : vector<8x128xf32>
    %103 = math.exp %102 : vector<8x128xf32>
    %cst_30 = arith.constant 1.000000e+00 : f32
    %104 = vector.broadcast %cst_30 : f32 to vector<8x128xf32>
    %105 = arith.addf %104, %103 : vector<8x128xf32>
    %106 = arith.divf %104, %105 : vector<8x128xf32>
    %107 = math.tanh %101 : vector<8x128xf32>
    %108 = arith.select %15, %106, %107 : vector<8x128xi1>, vector<8x128xf32>
    %109 = vector.extract_strided_slice %108 {offsets = [0, 0], sizes = [8, 32], strides = [1, 1]} : vector<8x128xf32> to vector<8x32xf32>
    %110 = vector.extract_strided_slice %108 {offsets = [0, 32], sizes = [8, 32], strides = [1, 1]} : vector<8x128xf32> to vector<8x32xf32>
    %111 = vector.extract_strided_slice %108 {offsets = [0, 64], sizes = [8, 32], strides = [1, 1]} : vector<8x128xf32> to vector<8x32xf32>
    %112 = vector.extract_strided_slice %108 {offsets = [0, 96], sizes = [8, 32], strides = [1, 1]} : vector<8x128xf32> to vector<8x32xf32>
    %113 = arith.mulf %110, %90 : vector<8x32xf32>
    %114 = arith.mulf %109, %112 : vector<8x32xf32>
    %115 = arith.addf %113, %114 : vector<8x32xf32>
    %116 = math.tanh %115 : vector<8x32xf32>
    %117 = arith.mulf %111, %116 : vector<8x32xf32>
    %c4_i32 = arith.constant 4 : i32
    %c8_i32_31 = arith.constant 8 : i32
    %118 = arith.muli %c4_i32, %c8_i32_31 : i32
    %119 = tpu.assume_multiple %118, 8 : i32
    %120 = arith.index_cast %119 : i32 to index
    %c0_32 = arith.constant 0 : index
    %121 = vector.load %arg8[%120, %c0_32] : memref<64x128xbf16, #tpu.memory_space<vmem>>, vector<8x128xbf16>
    %122 = arith.extf %121 : vector<8x128xbf16> to vector<8x128xf32>
    %123 = arith.addf %122, %12 : vector<8x128xf32>
    %124 = arith.truncf %117 : vector<8x32xf32> to vector<8x32xbf16>
    %cst_33 = arith.constant dense<0.000000e+00> : vector<8x128xf32>
    %125 = tpu.matmul %124, %9, %cst_33 {dimension_numbers = #tpu.dot_dimension_numbers<[1], [0], [0], [1], [0, 0, 1, 1], [], []>} : vector<8x32xbf16>, vector<32x128xbf16>, vector<8x128xf32> -> vector<8x128xf32>
    %126 = arith.addf %123, %125 : vector<8x128xf32>
    %127 = arith.negf %126 : vector<8x128xf32>
    %128 = math.exp %127 : vector<8x128xf32>
    %cst_34 = arith.constant 1.000000e+00 : f32
    %129 = vector.broadcast %cst_34 : f32 to vector<8x128xf32>
    %130 = arith.addf %129, %128 : vector<8x128xf32>
    %131 = arith.divf %129, %130 : vector<8x128xf32>
    %132 = math.tanh %126 : vector<8x128xf32>
    %133 = arith.select %15, %131, %132 : vector<8x128xi1>, vector<8x128xf32>
    %134 = vector.extract_strided_slice %133 {offsets = [0, 0], sizes = [8, 32], strides = [1, 1]} : vector<8x128xf32> to vector<8x32xf32>
    %135 = vector.extract_strided_slice %133 {offsets = [0, 32], sizes = [8, 32], strides = [1, 1]} : vector<8x128xf32> to vector<8x32xf32>
    %136 = vector.extract_strided_slice %133 {offsets = [0, 64], sizes = [8, 32], strides = [1, 1]} : vector<8x128xf32> to vector<8x32xf32>
    %137 = vector.extract_strided_slice %133 {offsets = [0, 96], sizes = [8, 32], strides = [1, 1]} : vector<8x128xf32> to vector<8x32xf32>
    %138 = arith.mulf %135, %115 : vector<8x32xf32>
    %139 = arith.mulf %134, %137 : vector<8x32xf32>
    %140 = arith.addf %138, %139 : vector<8x32xf32>
    %141 = math.tanh %140 : vector<8x32xf32>
    %142 = arith.mulf %136, %141 : vector<8x32xf32>
    %c5_i32 = arith.constant 5 : i32
    %c8_i32_35 = arith.constant 8 : i32
    %143 = arith.muli %c5_i32, %c8_i32_35 : i32
    %144 = tpu.assume_multiple %143, 8 : i32
    %145 = arith.index_cast %144 : i32 to index
    %c0_36 = arith.constant 0 : index
    %146 = vector.load %arg8[%145, %c0_36] : memref<64x128xbf16, #tpu.memory_space<vmem>>, vector<8x128xbf16>
    %147 = arith.extf %146 : vector<8x128xbf16> to vector<8x128xf32>
    %148 = arith.addf %147, %12 : vector<8x128xf32>
    %149 = arith.truncf %142 : vector<8x32xf32> to vector<8x32xbf16>
    %cst_37 = arith.constant dense<0.000000e+00> : vector<8x128xf32>
    %150 = tpu.matmul %149, %9, %cst_37 {dimension_numbers = #tpu.dot_dimension_numbers<[1], [0], [0], [1], [0, 0, 1, 1], [], []>} : vector<8x32xbf16>, vector<32x128xbf16>, vector<8x128xf32> -> vector<8x128xf32>
    %151 = arith.addf %148, %150 : vector<8x128xf32>
    %152 = arith.negf %151 : vector<8x128xf32>
    %153 = math.exp %152 : vector<8x128xf32>
    %cst_38 = arith.constant 1.000000e+00 : f32
    %154 = vector.broadcast %cst_38 : f32 to vector<8x128xf32>
    %155 = arith.addf %154, %153 : vector<8x128xf32>
    %156 = arith.divf %154, %155 : vector<8x128xf32>
    %157 = math.tanh %151 : vector<8x128xf32>
    %158 = arith.select %15, %156, %157 : vector<8x128xi1>, vector<8x128xf32>
    %159 = vector.extract_strided_slice %158 {offsets = [0, 0], sizes = [8, 32], strides = [1, 1]} : vector<8x128xf32> to vector<8x32xf32>
    %160 = vector.extract_strided_slice %158 {offsets = [0, 32], sizes = [8, 32], strides = [1, 1]} : vector<8x128xf32> to vector<8x32xf32>
    %161 = vector.extract_strided_slice %158 {offsets = [0, 64], sizes = [8, 32], strides = [1, 1]} : vector<8x128xf32> to vector<8x32xf32>
    %162 = vector.extract_strided_slice %158 {offsets = [0, 96], sizes = [8, 32], strides = [1, 1]} : vector<8x128xf32> to vector<8x32xf32>
    %163 = arith.mulf %160, %140 : vector<8x32xf32>
    %164 = arith.mulf %159, %162 : vector<8x32xf32>
    %165 = arith.addf %163, %164 : vector<8x32xf32>
    %166 = math.tanh %165 : vector<8x32xf32>
    %167 = arith.mulf %161, %166 : vector<8x32xf32>
    %c6_i32 = arith.constant 6 : i32
    %c8_i32_39 = arith.constant 8 : i32
    %168 = arith.muli %c6_i32, %c8_i32_39 : i32
    %169 = tpu.assume_multiple %168, 8 : i32
    %170 = arith.index_cast %169 : i32 to index
    %c0_40 = arith.constant 0 : index
    %171 = vector.load %arg8[%170, %c0_40] : memref<64x128xbf16, #tpu.memory_space<vmem>>, vector<8x128xbf16>
    %172 = arith.extf %171 : vector<8x128xbf16> to vector<8x128xf32>
    %173 = arith.addf %172, %12 : vector<8x128xf32>
    %174 = arith.truncf %167 : vector<8x32xf32> to vector<8x32xbf16>
    %cst_41 = arith.constant dense<0.000000e+00> : vector<8x128xf32>
    %175 = tpu.matmul %174, %9, %cst_41 {dimension_numbers = #tpu.dot_dimension_numbers<[1], [0], [0], [1], [0, 0, 1, 1], [], []>} : vector<8x32xbf16>, vector<32x128xbf16>, vector<8x128xf32> -> vector<8x128xf32>
    %176 = arith.addf %173, %175 : vector<8x128xf32>
    %177 = arith.negf %176 : vector<8x128xf32>
    %178 = math.exp %177 : vector<8x128xf32>
    %cst_42 = arith.constant 1.000000e+00 : f32
    %179 = vector.broadcast %cst_42 : f32 to vector<8x128xf32>
    %180 = arith.addf %179, %178 : vector<8x128xf32>
    %181 = arith.divf %179, %180 : vector<8x128xf32>
    %182 = math.tanh %176 : vector<8x128xf32>
    %183 = arith.select %15, %181, %182 : vector<8x128xi1>, vector<8x128xf32>
    %184 = vector.extract_strided_slice %183 {offsets = [0, 0], sizes = [8, 32], strides = [1, 1]} : vector<8x128xf32> to vector<8x32xf32>
    %185 = vector.extract_strided_slice %183 {offsets = [0, 32], sizes = [8, 32], strides = [1, 1]} : vector<8x128xf32> to vector<8x32xf32>
    %186 = vector.extract_strided_slice %183 {offsets = [0, 64], sizes = [8, 32], strides = [1, 1]} : vector<8x128xf32> to vector<8x32xf32>
    %187 = vector.extract_strided_slice %183 {offsets = [0, 96], sizes = [8, 32], strides = [1, 1]} : vector<8x128xf32> to vector<8x32xf32>
    %188 = arith.mulf %185, %165 : vector<8x32xf32>
    %189 = arith.mulf %184, %187 : vector<8x32xf32>
    %190 = arith.addf %188, %189 : vector<8x32xf32>
    %191 = math.tanh %190 : vector<8x32xf32>
    %192 = arith.mulf %186, %191 : vector<8x32xf32>
    %c7_i32 = arith.constant 7 : i32
    %c8_i32_43 = arith.constant 8 : i32
    %193 = arith.muli %c7_i32, %c8_i32_43 : i32
    %194 = tpu.assume_multiple %193, 8 : i32
    %195 = arith.index_cast %194 : i32 to index
    %c0_44 = arith.constant 0 : index
    %196 = vector.load %arg8[%195, %c0_44] : memref<64x128xbf16, #tpu.memory_space<vmem>>, vector<8x128xbf16>
    %197 = arith.extf %196 : vector<8x128xbf16> to vector<8x128xf32>
    %198 = arith.addf %197, %12 : vector<8x128xf32>
    %199 = arith.truncf %192 : vector<8x32xf32> to vector<8x32xbf16>
    %cst_45 = arith.constant dense<0.000000e+00> : vector<8x128xf32>
    %200 = tpu.matmul %199, %9, %cst_45 {dimension_numbers = #tpu.dot_dimension_numbers<[1], [0], [0], [1], [0, 0, 1, 1], [], []>} : vector<8x32xbf16>, vector<32x128xbf16>, vector<8x128xf32> -> vector<8x128xf32>
    %201 = arith.addf %198, %200 : vector<8x128xf32>
    %202 = arith.negf %201 : vector<8x128xf32>
    %203 = math.exp %202 : vector<8x128xf32>
    %cst_46 = arith.constant 1.000000e+00 : f32
    %204 = vector.broadcast %cst_46 : f32 to vector<8x128xf32>
    %205 = arith.addf %204, %203 : vector<8x128xf32>
    %206 = arith.divf %204, %205 : vector<8x128xf32>
    %207 = math.tanh %201 : vector<8x128xf32>
    %208 = arith.select %15, %206, %207 : vector<8x128xi1>, vector<8x128xf32>
    %209 = vector.extract_strided_slice %208 {offsets = [0, 0], sizes = [8, 32], strides = [1, 1]} : vector<8x128xf32> to vector<8x32xf32>
    %210 = vector.extract_strided_slice %208 {offsets = [0, 32], sizes = [8, 32], strides = [1, 1]} : vector<8x128xf32> to vector<8x32xf32>
    %211 = vector.extract_strided_slice %208 {offsets = [0, 64], sizes = [8, 32], strides = [1, 1]} : vector<8x128xf32> to vector<8x32xf32>
    %212 = vector.extract_strided_slice %208 {offsets = [0, 96], sizes = [8, 32], strides = [1, 1]} : vector<8x128xf32> to vector<8x32xf32>
    %213 = arith.mulf %210, %190 : vector<8x32xf32>
    %214 = arith.mulf %209, %212 : vector<8x32xf32>
    %215 = arith.addf %213, %214 : vector<8x32xf32>
    %216 = math.tanh %215 : vector<8x32xf32>
    %217 = arith.mulf %211, %216 : vector<8x32xf32>
    %c8_i32_47 = arith.constant 8 : i32
    %c0_48 = arith.constant 0 : index
    %c0_49 = arith.constant 0 : index
    %218 = vector.load %arg9[%c0_48, %c0_49] : memref<8x32xf32, #tpu.memory_space<vmem>>, vector<8x32xf32>
    tpu.vector_store %arg9[%c0_48, %c0_49], %217 {strides = array<i32>} : memref<8x32xf32, #tpu.memory_space<vmem>>, vector<8x32xf32>,
    %c0_50 = arith.constant 0 : index
    %c0_51 = arith.constant 0 : index
    %219 = vector.load %arg10[%c0_50, %c0_51] : memref<8x32xf32, #tpu.memory_space<vmem>>, vector<8x32xf32>
    tpu.vector_store %arg10[%c0_50, %c0_51], %215 {strides = array<i32>} : memref<8x32xf32, #tpu.memory_space<vmem>>, vector<8x32xf32>,
    %c0_i32_52 = arith.constant 0 : i32
    %220 = arith.cmpi eq, %arg1, %c0_i32_52 : i32
    %221 = arith.extui %220 : i1 to i32
    %c0_i32_53 = arith.constant 0 : i32
    %222 = arith.cmpi ne, %221, %c0_i32_53 : i32
    scf.if %222 {
      %c0_54 = arith.constant 0 : index
      %c0_55 = arith.constant 0 : index
      %c0_56 = arith.constant 0 : index
      %223 = vector.load %arg6[%c0_54, %c0_55, %c0_56] : memref<1x8x32xf32, #tpu.memory_space<vmem>>, vector<1x8x32xf32>
      %224 = vector.shape_cast %223 : vector<1x8x32xf32> to vector<8x32xf32>
      %225 = vector.shape_cast %217 : vector<8x32xf32> to vector<1x8x32xf32>
      tpu.vector_store %arg6[%c0_54, %c0_55, %c0_56], %225 {strides = array<i32>} : memref<1x8x32xf32, #tpu.memory_space<vmem>>, vector<1x8x32xf32>,
      %c0_57 = arith.constant 0 : index
      %c0_58 = arith.constant 0 : index
      %c0_59 = arith.constant 0 : index
      %226 = vector.load %arg7[%c0_57, %c0_58, %c0_59] : memref<1x8x32xf32, #tpu.memory_space<vmem>>, vector<1x8x32xf32>
      %227 = vector.shape_cast %226 : vector<1x8x32xf32> to vector<8x32xf32>
      %228 = vector.shape_cast %215 : vector<8x32xf32> to vector<1x8x32xf32>
      tpu.vector_store %arg7[%c0_57, %c0_58, %c0_59], %228 {strides = array<i32>} : memref<1x8x32xf32, #tpu.memory_space<vmem>>, vector<1x8x32xf32>,
    } else {
    }
    return
  }
  func.func @transform_0(%arg0: i32, %arg1: i32) -> (i32, i32, i32) {
    %c0_i32 = arith.constant 0 : i32
    %c0_i32_0 = arith.constant 0 : i32
    return %arg1, %arg0, %c0_i32 : i32, i32, i32
  }
  func.func @transform_1(%arg0: i32, %arg1: i32) -> (i32, i32) {
    %c0_i32 = arith.constant 0 : i32
    %c0_i32_0 = arith.constant 0 : i32
    %c0_i32_1 = arith.constant 0 : i32
    return %c0_i32, %c0_i32_0 : i32, i32
  }
  func.func @transform_2(%arg0: i32, %arg1: i32) -> (i32, i32) {
    %c0_i32 = arith.constant 0 : i32
    %c0_i32_0 = arith.constant 0 : i32
    %c0_i32_1 = arith.constant 0 : i32
    return %c0_i32, %c0_i32_0 : i32, i32
  }
  func.func @transform_3(%arg0: i32, %arg1: i32) -> (i32, i32) {
    %c0_i32 = arith.constant 0 : i32
    %c0_i32_0 = arith.constant 0 : i32
    %c0_i32_1 = arith.constant 0 : i32
    return %c0_i32, %c0_i32_0 : i32, i32
  }
  func.func @transform_4(%arg0: i32, %arg1: i32) -> (i32, i32, i32) {
    %c0_i32 = arith.constant 0 : i32
    %c0_i32_0 = arith.constant 0 : i32
    %c0_i32_1 = arith.constant 0 : i32
    return %c0_i32, %arg0, %c0_i32_0 : i32, i32, i32
  }
  func.func @transform_5(%arg0: i32, %arg1: i32) -> (i32, i32, i32) {
    %c0_i32 = arith.constant 0 : i32
    %c0_i32_0 = arith.constant 0 : i32
    %c0_i32_1 = arith.constant 0 : i32
    return %c0_i32, %arg0, %c0_i32_0 : i32, i32, i32
  }
}

</mosaic_0001>

<llo_original>
// kernel: tpu_custom_call.1
$region0: #{tpu_custom_call.1}
  #allocation0 [shape = 'u32[]', space=smem, size = 0x4, offset = 0x4, fixed_abs, tag = 'smem constant byte address 0x4 - core index']
  #allocation1 [shape = 'u32[144,128]{1,0:T(1,128)}', space=vmem, size = 0x12000, scoped, tag = 'internal scratch']
  #allocation2 [shape = 'bf16[64,128]{1,0:T(8,128)(2,1)}', space=vmem, size = 0x4000, scoped, tag = 'scratch operand']
  #allocation3 [shape = 'f32[8,32]{1,0:T(8,128)}', space=vmem, size = 0x1000, scoped, tag = 'scratch operand']
  #allocation4 [shape = 'f32[8,32]{1,0:T(8,128)}', space=vmem, size = 0x1000, scoped, tag = 'scratch operand']
  %s0 = inlined_call_operand.hbm [shape: bf16[8,8,16], index: 0, kind: input, shape index: {}]
  %s1 = inlined_call_operand.hbm [shape: bf16[16,128], index: 1, kind: input, shape index: {}]
  %s2 = inlined_call_operand.hbm [shape: bf16[32,128], index: 2, kind: input, shape index: {}]
  %s3 = inlined_call_operand.vmem [shape: f32[1,128], index: 3, kind: input, shape index: {}]
  %s4 = inlined_call_operand.hbm [shape: f32[1,8,32], index: 4, kind: output, shape index: {0}]
  %s5 = inlined_call_operand.hbm [shape: f32[1,8,32], index: 5, kind: output, shape index: {1}]
  %6 = xla_tuple %s4, %s5
  %s7 = sld [smem:[#allocation0]]
  $region54: #{tpu_custom_call.1} parent=0
    _
  %s9 = ssub.s32 1, %s7
  %s10 = scalar_select 0, %s9, %s7
  $region1: #{tpu_custom_call.1} parent=0
    #allocation5 [shape = 'u8[16384]{0}', space=vmem, size = 0x4000, scoped, tag = 'input window, operand 0, single buffered']
    #allocation6 [shape = 's32[1]{0}', space=sflag, size = 0x4, scoped, tag = 'scoped memory for tpu_custom_call.1']
    #allocation7 [shape = 's32[1]{0}', space=sflag, size = 0x4, scoped, tag = 'scoped memory for tpu_custom_call.1']
    #allocation8 [shape = 'u8[4096]{0}', space=vmem, size = 0x1000, scoped, tag = 'input window, operand 1, single buffered']
    #allocation9 [shape = 's32[1]{0}', space=sflag, size = 0x4, scoped, tag = 'scoped memory for tpu_custom_call.1']
    #allocation10 [shape = 'u8[8192]{0}', space=vmem, size = 0x2000, scoped, tag = 'input window, operand 2, single buffered']
    #allocation11 [shape = 'u8[4096]{0}', space=vmem, size = 0x1000, scoped, tag = 'output window, operand 0, single buffered']
    #allocation12 [shape = 'u8[4096]{0}', space=vmem, size = 0x1000, scoped, tag = 'output window, operand 1, single buffered']
    #allocation13 [shape = 's32[1]{0}', space=sflag, size = 0x4, scoped, tag = 'scoped memory for tpu_custom_call.1']
    %11 = vsyncpa [#allocation6], 0
    %12 = vsyncpa [#allocation9], 0
    %13 = vsyncpa [#allocation7], 0
    %14 = vsyncpa [#allocation13], 0
    // Predicated region
    $region2: #{tpu_custom_call.1} parent=1 // pred_check
      _
    $region3: #{tpu_custom_call.1} parent=1 // pred_check_branch
      %16 = sbr.rel (0) target = $region5
    $region4: #{tpu_custom_call.1} parent=1 // pred_region
      %s18 = ssub.s32 512, 512
      %19 = vsyncadd [#allocation6], %s18
      %s20 = sshll.u32 [#allocation5], 4
      %s21 = int_to_ptr.vmem [resolvable:$true] %s20
      %26 = dma.hbm_to_vmem [thread:$0]  %s0, 512, %s21, [#allocation6], 64, 64, 4
    $region5: #{tpu_custom_call.1} parent=1 // pred_fallthru
      _
    // Predicated region
    $region6: #{tpu_custom_call.1} parent=1 // pred_check
      _
    $region7: #{tpu_custom_call.1} parent=1 // pred_check_branch
      %28 = sbr.rel (0) target = $region9
    $region8: #{tpu_custom_call.1} parent=1 // pred_region
      %s30 = ssub.s32 128, 128
      %31 = vsyncadd [#allocation9], %s30
      %s32 = sshll.u32 [#allocation8], 4
      %s33 = int_to_ptr.vmem [resolvable:$true] %s32
      %38 = dma.hbm_to_vmem [thread:$0]  %s1, 128, %s33, [#allocation9], 64, 64, 4
    $region9: #{tpu_custom_call.1} parent=1 // pred_fallthru
      _
    // Predicated region
    $region10: #{tpu_custom_call.1} parent=1 // pred_check
      _
    $region11: #{tpu_custom_call.1} parent=1 // pred_check_branch
      %40 = sbr.rel (0) target = $region13
    $region12: #{tpu_custom_call.1} parent=1 // pred_region
      %s42 = ssub.s32 256, 256
      %43 = vsyncadd [#allocation9], %s42
      %s44 = sshll.u32 [#allocation10], 4
      %s45 = int_to_ptr.vmem [resolvable:$true] %s44
      %50 = dma.hbm_to_vmem [thread:$0]  %s2, 256, %s45, [#allocation9], 64, 64, 4
    $region13: #{tpu_custom_call.1} parent=1 // pred_fallthru
      _
    // Predicated region
    $region14: #{tpu_custom_call.1} parent=1 // pred_check
      _
    $region15: #{tpu_custom_call.1} parent=1 // pred_check_branch
      %52 = sbr.rel (0) target = $region17
    $region16: #{tpu_custom_call.1} parent=1 // pred_region
      _
    $region17: #{tpu_custom_call.1} parent=1 // pred_fallthru
      _
    // Predicated region
    $region18: #{tpu_custom_call.1} parent=1 // pred_check
      _
    $region19: #{tpu_custom_call.1} parent=1 // pred_check_branch
      %54 = sbr.rel (0) target = $region21
    $region20: #{tpu_custom_call.1} parent=1 // pred_region
      %55 = dma.done [#allocation6], 512
    $region21: #{tpu_custom_call.1} parent=1 // pred_fallthru
      _
    // Predicated region
    $region22: #{tpu_custom_call.1} parent=1 // pred_check
      _
    $region23: #{tpu_custom_call.1} parent=1 // pred_check_branch
      %57 = sbr.rel (0) target = $region25
    $region24: #{tpu_custom_call.1} parent=1 // pred_region
      %58 = dma.done [#allocation9], 128
    $region25: #{tpu_custom_call.1} parent=1 // pred_fallthru
      _
    // Predicated region
    $region26: #{tpu_custom_call.1} parent=1 // pred_check
      _
    $region27: #{tpu_custom_call.1} parent=1 // pred_check_branch
      %60 = sbr.rel (0) target = $region29
    $region28: #{tpu_custom_call.1} parent=1 // pred_region
      %61 = dma.done [#allocation9], 256
    $region29: #{tpu_custom_call.1} parent=1 // pred_fallthru
      _
    %p63 = scmp.eq.s32.totalorder 0, 0
    // Predicated region
    $region30: #{tpu_custom_call.1} parent=1 // pred_check
      %p64 = pneg %p63
    $region31: #{tpu_custom_call.1} parent=1 // pred_check_branch
      %66 = sbr.rel (%p64) target = $region33
    $region32: #{tpu_custom_call.1} parent=1 // pred_region
      %vm67 = vcmask 261120
      %68 = vst.msk [vmem:[#allocation3] sm:$0xff] %vm67, 0.0
      %69 = vst.msk [vmem:[#allocation4] sm:$0xff] %vm67, 0.0
    $region33: #{tpu_custom_call.1} parent=1 // pred_fallthru
      _
    %v70 = vld [vmem:[#allocation5] sm:$0xf]
    %v71 = vld [vmem:[#allocation5 + $0x4] sm:$0xf]
    %v72 = vld [vmem:[#allocation5 + $0x8] sm:$0xf]
    %v73 = vld [vmem:[#allocation5 + $0xc] sm:$0xf]
    %v74 = vld [vmem:[#allocation5 + $0x10] sm:$0xf]
    %v75 = vld [vmem:[#allocation5 + $0x14] sm:$0xf]
    %v76 = vld [vmem:[#allocation5 + $0x18] sm:$0xf]
    %v77 = vld [vmem:[#allocation5 + $0x1c] sm:$0xf]
    %v78 = vld [vmem:[#allocation8] sm:$0xf]
    %v79 = vld [vmem:[#allocation8 + $0x4] sm:$0xf]
    %v88 = vunpack.c.l.b16 %v70
    %v89 = vunpack.c.l.b16 %v71
    %v90 = vunpack.c.l.b16 %v72
    %v91 = vunpack.c.l.b16 %v73
    %v92 = vunpack.c.l.b16 %v74
    %v93 = vunpack.c.l.b16 %v75
    %v94 = vunpack.c.l.b16 %v76
    %v95 = vunpack.c.l.b16 %v77
    %v96 = vpack.c.b16 %v89, %v88
    %v97 = vpack.c.b16 %v91, %v90
    %v98 = vpack.c.b16 %v93, %v92
    %v99 = vpack.c.b16 %v95, %v94
    %v102 = vunpack.c.l.b16 %v78
    %v103 = vunpack.c.l.b16 %v79
    %v104 = vpack.c.b16 %v103, %v102
    %vm106 = vcmask 130048
    %v108 = vsel %vm106, %v96, 0
    %v111 = vsel %vm106, %v97, 0
    %v114 = vsel %vm106, %v98, 0
    %v117 = vsel %vm106, %v99, 0
    %119 = vmatprep.subr.bf16.mxu0 0
    %120 = vmatpush1.bf16.msra.mxu0 0
    %121 = vmatprep.subr.bf16.mxu0 0
    %122 = vmatpush1.bf16.msra.mxu0 0
    %123 = vmatprep.subr.bf16.mxu0 0
    %124 = vmatpush1.bf16.msra.mxu0 0
    %125 = vmatprep.subr.bf16.mxu0 0
    %126 = vmatpush1.bf16.msra.mxu0 0
    %127 = vmatprep.subr.bf16.mxu0 0
    %128 = vmatpush1.bf16.msra.mxu0 0
    %129 = vmatprep.subr.bf16.mxu0 0
    %130 = vmatpush1.bf16.msra.mxu0 0
    %131 = vmatprep.subr.bf16.mxu0 0
    %132 = vmatpush1.bf16.msra.mxu0 0
    %133 = vmatprep.subr.bf16.mxu0 0
    %134 = vmatpush1.bf16.msra.mxu0 %v104
    %135 = vmatprep.subr.bf16.mxu0 0
    %136 = vmatpush2.bf16.msra.mxu0 0
    %137 = vmatprep.subr.bf16.mxu0 0
    %138 = vmatpush2.bf16.msra.mxu0 0
    %139 = vmatprep.subr.bf16.mxu0 0
    %140 = vmatpush2.bf16.msra.mxu0 0
    %141 = vmatprep.subr.bf16.mxu0 0
    %142 = vmatpush2.bf16.msra.mxu0 0
    %143 = vmatprep.subr.bf16.mxu0 0
    %144 = vmatpush2.bf16.msra.mxu0 0
    %145 = vmatprep.subr.bf16.mxu0 0
    %146 = vmatpush2.bf16.msra.mxu0 0
    %147 = vmatprep.subr.bf16.mxu0 0
    %148 = vmatpush2.bf16.msra.mxu0 0
    %149 = vmatprep.subr.bf16.mxu0 0
    %150 = vmatpush2.bf16.msra.mxu0 0
    %151 = vmatprep.mubr.bf16.mxu0 0
    %152 = vmatmul.mubr.bf16.gmra.mxu0 %v108
    %v153 = vpop.f32.mrf.mxu0
    %v154 = vadd.f32 0.0, %v153
    %v155 = vpop.f32.mrf.mxu0
    %v156 = vpop.f32.mrf.mxu0
    %v157 = vadd.f32 0.0, %v156
    %v158 = vpop.f32.mrf.mxu0
    %159 = vmatprep.mubr.bf16.mxu0 0
    %160 = vmatmul.mubr.bf16.gmra.mxu0 %v111
    %v161 = vpop.f32.mrf.mxu0
    %v162 = vadd.f32 0.0, %v161
    %v163 = vpop.f32.mrf.mxu0
    %v164 = vpop.f32.mrf.mxu0
    %v165 = vadd.f32 0.0, %v164
    %v166 = vpop.f32.mrf.mxu0
    %167 = vmatprep.mubr.bf16.mxu0 0
    %168 = vmatmul.mubr.bf16.gmra.mxu0 %v114
    %v169 = vpop.f32.mrf.mxu0
    %v170 = vadd.f32 0.0, %v169
    %v171 = vpop.f32.mrf.mxu0
    %v172 = vpop.f32.mrf.mxu0
    %v173 = vadd.f32 0.0, %v172
    %v174 = vpop.f32.mrf.mxu0
    %175 = vmatprep.mubr.bf16.mxu0 0
    %176 = vmatmul.mubr.bf16.gmra.mxu0 %v117
    %v177 = vpop.f32.mrf.mxu0
    %v178 = vadd.f32 0.0, %v177
    %v179 = vpop.f32.mrf.mxu0
    %v180 = vpop.f32.mrf.mxu0
    %v181 = vadd.f32 0.0, %v180
    %v182 = vpop.f32.mrf.mxu0
    %183 = vdwg.mxu0
    %v184 = vpack.c.bf16 %v157, %v154
    %v185 = vpack.c.bf16 %v165, %v162
    %v186 = vpack.c.bf16 %v173, %v170
    %v187 = vpack.c.bf16 %v181, %v178
    %v192 = vunpack.c.l.b16 %v184
    %v193 = vunpack.c.h.b16 %v184
    %v194 = vunpack.c.l.b16 %v185
    %v195 = vunpack.c.h.b16 %v185
    %v196 = vunpack.c.l.b16 %v186
    %v197 = vunpack.c.h.b16 %v186
    %v198 = vunpack.c.l.b16 %v187
    %v199 = vunpack.c.h.b16 %v187
    %v200 = vpack.c.b16 %v192, %v192
    %v201 = vpack.c.b16 %v193, %v193
    %v202 = vpack.c.b16 %v194, %v194
    %v203 = vpack.c.b16 %v195, %v195
    %v204 = vpack.c.b16 %v196, %v196
    %v205 = vpack.c.b16 %v197, %v197
    %v206 = vpack.c.b16 %v198, %v198
    %v207 = vpack.c.b16 %v199, %v199
    %216 = vst [vmem:[#allocation2] sm:$0xf] %v200
    %217 = vst [vmem:[#allocation2 + $0x4] sm:$0xf] %v201
    %218 = vst [vmem:[#allocation2 + $0x8] sm:$0xf] %v202
    %219 = vst [vmem:[#allocation2 + $0xc] sm:$0xf] %v203
    %220 = vst [vmem:[#allocation2 + $0x10] sm:$0xf] %v204
    %221 = vst [vmem:[#allocation2 + $0x14] sm:$0xf] %v205
    %222 = vst [vmem:[#allocation2 + $0x18] sm:$0xf] %v206
    %223 = vst [vmem:[#allocation2 + $0x1c] sm:$0xf] %v207
    %v224 = vld [vmem:[#allocation10] sm:$0xf]
    %v225 = vld [vmem:[#allocation10 + $0x4] sm:$0xf]
    %v226 = vld [vmem:[#allocation10 + $0x8] sm:$0xf]
    %v227 = vld [vmem:[#allocation10 + $0xc] sm:$0xf]
    %v228 = vld [vmem:[%s3] sm:$0x1]
    %v230 = vlaneseq
    %v231 = vshrl.u32 %v230, 7
    %v232 = vsub.s32 0, %v231
    %v233 = vrot.slane %v228, %v232
    %v235 = vlaneseq
    %v236 = vand.u32 %v235, 127
    %vm237 = vcmp.lt.s32.totalorder %v236, 96
    %v238 = vld [vmem:[#allocation3] sm:$0xff]
    %v239 = vld [vmem:[#allocation4] sm:$0xff]
    %v240 = vld [vmem:[#allocation2] sm:$0xf]
    %v241 = vunpack.c.l.bf16 %v240
    %v242 = vadd.f32 %v241, %v233
    %v243 = vpack.c.bf16 %v238, %v238
    %v248 = vunpack.c.l.b16 %v224
    %v249 = vunpack.c.l.b16 %v225
    %v250 = vunpack.c.l.b16 %v226
    %v251 = vunpack.c.l.b16 %v227
    %v252 = vpack.c.b16 %v249, %v248
    %v253 = vpack.c.b16 %v251, %v250
    %vm256 = vcmask 261120
    %v258 = vsel %vm256, %v243, 0
    %260 = vmatprep.subr.bf16.mxu0 0
    %261 = vmatpush1.bf16.msra.mxu0 0
    %262 = vmatprep.subr.bf16.mxu0 0
    %263 = vmatpush1.bf16.msra.mxu0 0
    %264 = vmatprep.subr.bf16.mxu0 0
    %265 = vmatpush1.bf16.msra.mxu0 0
    %266 = vmatprep.subr.bf16.mxu0 0
    %267 = vmatpush1.bf16.msra.mxu0 0
    %268 = vmatprep.subr.bf16.mxu0 0
    %269 = vmatpush1.bf16.msra.mxu0 0
    %270 = vmatprep.subr.bf16.mxu0 0
    %271 = vmatpush1.bf16.msra.mxu0 0
    %272 = vmatprep.subr.bf16.mxu0 0
    %273 = vmatpush1.bf16.msra.mxu0 %v253
    %274 = vmatprep.subr.bf16.mxu0 0
    %275 = vmatpush1.bf16.msra.mxu0 %v252
    %276 = vmatprep.subr.bf16.mxu0 0
    %277 = vmatpush2.bf16.msra.mxu0 0
    %278 = vmatprep.subr.bf16.mxu0 0
    %279 = vmatpush2.bf16.msra.mxu0 0
    %280 = vmatprep.subr.bf16.mxu0 0
    %281 = vmatpush2.bf16.msra.mxu0 0
    %282 = vmatprep.subr.bf16.mxu0 0
    %283 = vmatpush2.bf16.msra.mxu0 0
    %284 = vmatprep.subr.bf16.mxu0 0
    %285 = vmatpush2.bf16.msra.mxu0 0
    %286 = vmatprep.subr.bf16.mxu0 0
    %287 = vmatpush2.bf16.msra.mxu0 0
    %288 = vmatprep.subr.bf16.mxu0 0
    %289 = vmatpush2.bf16.msra.mxu0 0
    %290 = vmatprep.subr.bf16.mxu0 0
    %291 = vmatpush2.bf16.msra.mxu0 0
    %292 = vmatprep.mubr.bf16.mxu0 0
    %293 = vmatmul.mubr.bf16.gmra.mxu0 %v258
    %v294 = vpop.f32.mrf.mxu0
    %v295 = vadd.f32 0.0, %v294
    %v296 = vpop.f32.mrf.mxu0
    %v297 = vpop.f32.mrf.mxu0
    %v298 = vpop.f32.mrf.mxu0
    %299 = vdwg.mxu0
    %v300 = vadd.f32 %v242, %v295
    %v301 = vxor.u32 %v300, 2147483648
    %v302 = vmul.f32 %v301, 1.442695
    %v303 = vpow.pop %v302
    %v304 = vadd.f32 %v303, 1.0
    %v305 = vrcp.pop %v304
    %v306 = vmul.f32 1.0, %v305
    %v307 = vtanh.pop %v300
    %v308 = vsel %vm237, %v306, %v307
    %310 = vrot.lane.b32.xlu0 %v239, 32
    %v311 = vpop.permute.xlu0 %310
    %v313 = vmul.f32 %v308, %v311
    %315 = vrot.lane.b32.xlu0 %v308, 32
    %v316 = vpop.permute.xlu0 %315
    %v318 = vmul.f32 %v308, %v316
    %320 = vrot.lane.b32.xlu0 %v318, 32
    %v321 = vpop.permute.xlu0 %320
    %v323 = vadd.f32 %v313, %v321
    %v324 = vtanh.pop %v323
    %326 = vrot.lane.b32.xlu0 %v324, 32
    %v327 = vpop.permute.xlu0 %326
    %v329 = vmul.f32 %v308, %v327
    %s330 = scalar_lea.vmem [#allocation2], 4
    %v331 = vld [vmem:[%s330] sm:$0xf]
    %v332 = vunpack.c.l.bf16 %v331
    %v333 = vadd.f32 %v332, %v233
    %v334 = vpack.c.bf16 %v329, %v329
    %336 = vrot.lane.b32.xlu0 %v334, 64
    %v337 = vpop.permute.xlu0 %336
    %v339 = vsel %vm256, %v337, 0
    %341 = vmatprep.subr.bf16.mxu0 0
    %342 = vmatpush1.bf16.msra.mxu0 0
    %343 = vmatprep.subr.bf16.mxu0 0
    %344 = vmatpush1.bf16.msra.mxu0 0
    %345 = vmatprep.subr.bf16.mxu0 0
    %346 = vmatpush1.bf16.msra.mxu0 0
    %347 = vmatprep.subr.bf16.mxu0 0
    %348 = vmatpush1.bf16.msra.mxu0 0
    %349 = vmatprep.subr.bf16.mxu0 0
    %350 = vmatpush1.bf16.msra.mxu0 0
    %351 = vmatprep.subr.bf16.mxu0 0
    %352 = vmatpush1.bf16.msra.mxu0 0
    %353 = vmatprep.subr.bf16.mxu0 0
    %354 = vmatpush1.bf16.msra.mxu0 %v253
    %355 = vmatprep.subr.bf16.mxu0 0
    %356 = vmatpush1.bf16.msra.mxu0 %v252
    %357 = vmatprep.subr.bf16.mxu0 0
    %358 = vmatpush2.bf16.msra.mxu0 0
    %359 = vmatprep.subr.bf16.mxu0 0
    %360 = vmatpush2.bf16.msra.mxu0 0
    %361 = vmatprep.subr.bf16.mxu0 0
    %362 = vmatpush2.bf16.msra.mxu0 0
    %363 = vmatprep.subr.bf16.mxu0 0
    %364 = vmatpush2.bf16.msra.mxu0 0
    %365 = vmatprep.subr.bf16.mxu0 0
    %366 = vmatpush2.bf16.msra.mxu0 0
    %367 = vmatprep.subr.bf16.mxu0 0
    %368 = vmatpush2.bf16.msra.mxu0 0
    %369 = vmatprep.subr.bf16.mxu0 0
    %370 = vmatpush2.bf16.msra.mxu0 0
    %371 = vmatprep.subr.bf16.mxu0 0
    %372 = vmatpush2.bf16.msra.mxu0 0
    %373 = vmatprep.mubr.bf16.mxu0 0
    %374 = vmatmul.mubr.bf16.gmra.mxu0 %v339
    %v375 = vpop.f32.mrf.mxu0
    %v376 = vadd.f32 0.0, %v375
    %v377 = vpop.f32.mrf.mxu0
    %v378 = vpop.f32.mrf.mxu0
    %v379 = vpop.f32.mrf.mxu0
    %380 = vdwg.mxu0
    %v381 = vadd.f32 %v333, %v376
    %v382 = vxor.u32 %v381, 2147483648
    %v383 = vmul.f32 %v382, 1.442695
    %v384 = vpow.pop %v383
    %v385 = vadd.f32 %v384, 1.0
    %v386 = vrcp.pop %v385
    %v387 = vmul.f32 1.0, %v386
    %v388 = vtanh.pop %v381
    %v389 = vsel %vm237, %v387, %v388
    %v390 = vmul.f32 %v389, %v323
    %392 = vrot.lane.b32.xlu0 %v389, 32
    %v393 = vpop.permute.xlu0 %392
    %v395 = vmul.f32 %v389, %v393
    %397 = vrot.lane.b32.xlu0 %v395, 32
    %v398 = vpop.permute.xlu0 %397
    %v400 = vadd.f32 %v390, %v398
    %v401 = vtanh.pop %v400
    %403 = vrot.lane.b32.xlu0 %v401, 32
    %v404 = vpop.permute.xlu0 %403
    %v406 = vmul.f32 %v389, %v404
    %s407 = scalar_lea.vmem [#allocation2], 8
    %v408 = vld [vmem:[%s407] sm:$0xf]
    %v409 = vunpack.c.l.bf16 %v408
    %v410 = vadd.f32 %v409, %v233
    %v411 = vpack.c.bf16 %v406, %v406
    %413 = vrot.lane.b32.xlu0 %v411, 64
    %v414 = vpop.permute.xlu0 %413
    %v416 = vsel %vm256, %v414, 0
    %418 = vmatprep.subr.bf16.mxu0 0
    %419 = vmatpush1.bf16.msra.mxu0 0
    %420 = vmatprep.subr.bf16.mxu0 0
    %421 = vmatpush1.bf16.msra.mxu0 0
    %422 = vmatprep.subr.bf16.mxu0 0
    %423 = vmatpush1.bf16.msra.mxu0 0
    %424 = vmatprep.subr.bf16.mxu0 0
    %425 = vmatpush1.bf16.msra.mxu0 0
    %426 = vmatprep.subr.bf16.mxu0 0
    %427 = vmatpush1.bf16.msra.mxu0 0
    %428 = vmatprep.subr.bf16.mxu0 0
    %429 = vmatpush1.bf16.msra.mxu0 0
    %430 = vmatprep.subr.bf16.mxu0 0
    %431 = vmatpush1.bf16.msra.mxu0 %v253
    %432 = vmatprep.subr.bf16.mxu0 0
    %433 = vmatpush1.bf16.msra.mxu0 %v252
    %434 = vmatprep.subr.bf16.mxu0 0
    %435 = vmatpush2.bf16.msra.mxu0 0
    %436 = vmatprep.subr.bf16.mxu0 0
    %437 = vmatpush2.bf16.msra.mxu0 0
    %438 = vmatprep.subr.bf16.mxu0 0
    %439 = vmatpush2.bf16.msra.mxu0 0
    %440 = vmatprep.subr.bf16.mxu0 0
    %441 = vmatpush2.bf16.msra.mxu0 0
    %442 = vmatprep.subr.bf16.mxu0 0
    %443 = vmatpush2.bf16.msra.mxu0 0
    %444 = vmatprep.subr.bf16.mxu0 0
    %445 = vmatpush2.bf16.msra.mxu0 0
    %446 = vmatprep.subr.bf16.mxu0 0
    %447 = vmatpush2.bf16.msra.mxu0 0
    %448 = vmatprep.subr.bf16.mxu0 0
    %449 = vmatpush2.bf16.msra.mxu0 0
    %450 = vmatprep.mubr.bf16.mxu0 0
    %451 = vmatmul.mubr.bf16.gmra.mxu0 %v416
    %v452 = vpop.f32.mrf.mxu0
    %v453 = vadd.f32 0.0, %v452
    %v454 = vpop.f32.mrf.mxu0
    %v455 = vpop.f32.mrf.mxu0
    %v456 = vpop.f32.mrf.mxu0
    %457 = vdwg.mxu0
    %v458 = vadd.f32 %v410, %v453
    %v459 = vxor.u32 %v458, 2147483648
    %v460 = vmul.f32 %v459, 1.442695
    %v461 = vpow.pop %v460
    %v462 = vadd.f32 %v461, 1.0
    %v463 = vrcp.pop %v462
    %v464 = vmul.f32 1.0, %v463
    %v465 = vtanh.pop %v458
    %v466 = vsel %vm237, %v464, %v465
    %v467 = vmul.f32 %v466, %v400
    %469 = vrot.lane.b32.xlu0 %v466, 32
    %v470 = vpop.permute.xlu0 %469
    %v472 = vmul.f32 %v466, %v470
    %474 = vrot.lane.b32.xlu0 %v472, 32
    %v475 = vpop.permute.xlu0 %474
    %v477 = vadd.f32 %v467, %v475
    %v478 = vtanh.pop %v477
    %480 = vrot.lane.b32.xlu0 %v478, 32
    %v481 = vpop.permute.xlu0 %480
    %v483 = vmul.f32 %v466, %v481
    %s484 = scalar_lea.vmem [#allocation2], 12
    %v485 = vld [vmem:[%s484] sm:$0xf]
    %v486 = vunpack.c.l.bf16 %v485
    %v487 = vadd.f32 %v486, %v233
    %v488 = vpack.c.bf16 %v483, %v483
    %490 = vrot.lane.b32.xlu0 %v488, 64
    %v491 = vpop.permute.xlu0 %490
    %v493 = vsel %vm256, %v491, 0
    %495 = vmatprep.subr.bf16.mxu0 0
    %496 = vmatpush1.bf16.msra.mxu0 0
    %497 = vmatprep.subr.bf16.mxu0 0
    %498 = vmatpush1.bf16.msra.mxu0 0
    %499 = vmatprep.subr.bf16.mxu0 0
    %500 = vmatpush1.bf16.msra.mxu0 0
    %501 = vmatprep.subr.bf16.mxu0 0
    %502 = vmatpush1.bf16.msra.mxu0 0
    %503 = vmatprep.subr.bf16.mxu0 0
    %504 = vmatpush1.bf16.msra.mxu0 0
    %505 = vmatprep.subr.bf16.mxu0 0
    %506 = vmatpush1.bf16.msra.mxu0 0
    %507 = vmatprep.subr.bf16.mxu0 0
    %508 = vmatpush1.bf16.msra.mxu0 %v253
    %509 = vmatprep.subr.bf16.mxu0 0
    %510 = vmatpush1.bf16.msra.mxu0 %v252
    %511 = vmatprep.subr.bf16.mxu0 0
    %512 = vmatpush2.bf16.msra.mxu0 0
    %513 = vmatprep.subr.bf16.mxu0 0
    %514 = vmatpush2.bf16.msra.mxu0 0
    %515 = vmatprep.subr.bf16.mxu0 0
    %516 = vmatpush2.bf16.msra.mxu0 0
    %517 = vmatprep.subr.bf16.mxu0 0
    %518 = vmatpush2.bf16.msra.mxu0 0
    %519 = vmatprep.subr.bf16.mxu0 0
    %520 = vmatpush2.bf16.msra.mxu0 0
    %521 = vmatprep.subr.bf16.mxu0 0
    %522 = vmatpush2.bf16.msra.mxu0 0
    %523 = vmatprep.subr.bf16.mxu0 0
    %524 = vmatpush2.bf16.msra.mxu0 0
    %525 = vmatprep.subr.bf16.mxu0 0
    %526 = vmatpush2.bf16.msra.mxu0 0
    %527 = vmatprep.mubr.bf16.mxu0 0
    %528 = vmatmul.mubr.bf16.gmra.mxu0 %v493
    %v529 = vpop.f32.mrf.mxu0
    %v530 = vadd.f32 0.0, %v529
    %v531 = vpop.f32.mrf.mxu0
    %v532 = vpop.f32.mrf.mxu0
    %v533 = vpop.f32.mrf.mxu0
    %534 = vdwg.mxu0
    %v535 = vadd.f32 %v487, %v530
    %v536 = vxor.u32 %v535, 2147483648
    %v537 = vmul.f32 %v536, 1.442695
    %v538 = vpow.pop %v537
    %v539 = vadd.f32 %v538, 1.0
    %v540 = vrcp.pop %v539
    %v541 = vmul.f32 1.0, %v540
    %v542 = vtanh.pop %v535
    %v543 = vsel %vm237, %v541, %v542
    %v544 = vmul.f32 %v543, %v477
    %546 = vrot.lane.b32.xlu0 %v543, 32
    %v547 = vpop.permute.xlu0 %546
    %v549 = vmul.f32 %v543, %v547
    %551 = vrot.lane.b32.xlu0 %v549, 32
    %v552 = vpop.permute.xlu0 %551
    %v554 = vadd.f32 %v544, %v552
    %v555 = vtanh.pop %v554
    %557 = vrot.lane.b32.xlu0 %v555, 32
    %v558 = vpop.permute.xlu0 %557
    %v560 = vmul.f32 %v543, %v558
    %s561 = scalar_lea.vmem [#allocation2], 16
    %v562 = vld [vmem:[%s561] sm:$0xf]
    %v563 = vunpack.c.l.bf16 %v562
    %v564 = vadd.f32 %v563, %v233
    %v565 = vpack.c.bf16 %v560, %v560
    %567 = vrot.lane.b32.xlu0 %v565, 64
    %v568 = vpop.permute.xlu0 %567
    %v570 = vsel %vm256, %v568, 0
    %572 = vmatprep.subr.bf16.mxu0 0
    %573 = vmatpush1.bf16.msra.mxu0 0
    %574 = vmatprep.subr.bf16.mxu0 0
    %575 = vmatpush1.bf16.msra.mxu0 0
    %576 = vmatprep.subr.bf16.mxu0 0
    %577 = vmatpush1.bf16.msra.mxu0 0
    %578 = vmatprep.subr.bf16.mxu0 0
    %579 = vmatpush1.bf16.msra.mxu0 0
    %580 = vmatprep.subr.bf16.mxu0 0
    %581 = vmatpush1.bf16.msra.mxu0 0
    %582 = vmatprep.subr.bf16.mxu0 0
    %583 = vmatpush1.bf16.msra.mxu0 0
    %584 = vmatprep.subr.bf16.mxu0 0
    %585 = vmatpush1.bf16.msra.mxu0 %v253
    %586 = vmatprep.subr.bf16.mxu0 0
    %587 = vmatpush1.bf16.msra.mxu0 %v252
    %588 = vmatprep.subr.bf16.mxu0 0
    %589 = vmatpush2.bf16.msra.mxu0 0
    %590 = vmatprep.subr.bf16.mxu0 0
    %591 = vmatpush2.bf16.msra.mxu0 0
    %592 = vmatprep.subr.bf16.mxu0 0
    %593 = vmatpush2.bf16.msra.mxu0 0
    %594 = vmatprep.subr.bf16.mxu0 0
    %595 = vmatpush2.bf16.msra.mxu0 0
    %596 = vmatprep.subr.bf16.mxu0 0
    %597 = vmatpush2.bf16.msra.mxu0 0
    %598 = vmatprep.subr.bf16.mxu0 0
    %599 = vmatpush2.bf16.msra.mxu0 0
    %600 = vmatprep.subr.bf16.mxu0 0
    %601 = vmatpush2.bf16.msra.mxu0 0
    %602 = vmatprep.subr.bf16.mxu0 0
    %603 = vmatpush2.bf16.msra.mxu0 0
    %604 = vmatprep.mubr.bf16.mxu0 0
    %605 = vmatmul.mubr.bf16.gmra.mxu0 %v570
    %v606 = vpop.f32.mrf.mxu0
    %v607 = vadd.f32 0.0, %v606
    %v608 = vpop.f32.mrf.mxu0
    %v609 = vpop.f32.mrf.mxu0
    %v610 = vpop.f32.mrf.mxu0
    %611 = vdwg.mxu0
    %v612 = vadd.f32 %v564, %v607
    %v613 = vxor.u32 %v612, 2147483648
    %v614 = vmul.f32 %v613, 1.442695
    %v615 = vpow.pop %v614
    %v616 = vadd.f32 %v615, 1.0
    %v617 = vrcp.pop %v616
    %v618 = vmul.f32 1.0, %v617
    %v619 = vtanh.pop %v612
    %v620 = vsel %vm237, %v618, %v619
    %v621 = vmul.f32 %v620, %v554
    %623 = vrot.lane.b32.xlu0 %v620, 32
    %v624 = vpop.permute.xlu0 %623
    %v626 = vmul.f32 %v620, %v624
    %628 = vrot.lane.b32.xlu0 %v626, 32
    %v629 = vpop.permute.xlu0 %628
    %v631 = vadd.f32 %v621, %v629
    %v632 = vtanh.pop %v631
    %634 = vrot.lane.b32.xlu0 %v632, 32
    %v635 = vpop.permute.xlu0 %634
    %v637 = vmul.f32 %v620, %v635
    %s638 = scalar_lea.vmem [#allocation2], 20
    %v639 = vld [vmem:[%s638] sm:$0xf]
    %v640 = vunpack.c.l.bf16 %v639
    %v641 = vadd.f32 %v640, %v233
    %v642 = vpack.c.bf16 %v637, %v637
    %644 = vrot.lane.b32.xlu0 %v642, 64
    %v645 = vpop.permute.xlu0 %644
    %v647 = vsel %vm256, %v645, 0
    %649 = vmatprep.subr.bf16.mxu0 0
    %650 = vmatpush1.bf16.msra.mxu0 0
    %651 = vmatprep.subr.bf16.mxu0 0
    %652 = vmatpush1.bf16.msra.mxu0 0
    %653 = vmatprep.subr.bf16.mxu0 0
    %654 = vmatpush1.bf16.msra.mxu0 0
    %655 = vmatprep.subr.bf16.mxu0 0
    %656 = vmatpush1.bf16.msra.mxu0 0
    %657 = vmatprep.subr.bf16.mxu0 0
    %658 = vmatpush1.bf16.msra.mxu0 0
    %659 = vmatprep.subr.bf16.mxu0 0
    %660 = vmatpush1.bf16.msra.mxu0 0
    %661 = vmatprep.subr.bf16.mxu0 0
    %662 = vmatpush1.bf16.msra.mxu0 %v253
    %663 = vmatprep.subr.bf16.mxu0 0
    %664 = vmatpush1.bf16.msra.mxu0 %v252
    %665 = vmatprep.subr.bf16.mxu0 0
    %666 = vmatpush2.bf16.msra.mxu0 0
    %667 = vmatprep.subr.bf16.mxu0 0
    %668 = vmatpush2.bf16.msra.mxu0 0
    %669 = vmatprep.subr.bf16.mxu0 0
    %670 = vmatpush2.bf16.msra.mxu0 0
    %671 = vmatprep.subr.bf16.mxu0 0
    %672 = vmatpush2.bf16.msra.mxu0 0
    %673 = vmatprep.subr.bf16.mxu0 0
    %674 = vmatpush2.bf16.msra.mxu0 0
    %675 = vmatprep.subr.bf16.mxu0 0
    %676 = vmatpush2.bf16.msra.mxu0 0
    %677 = vmatprep.subr.bf16.mxu0 0
    %678 = vmatpush2.bf16.msra.mxu0 0
    %679 = vmatprep.subr.bf16.mxu0 0
    %680 = vmatpush2.bf16.msra.mxu0 0
    %681 = vmatprep.mubr.bf16.mxu0 0
    %682 = vmatmul.mubr.bf16.gmra.mxu0 %v647
    %v683 = vpop.f32.mrf.mxu0
    %v684 = vadd.f32 0.0, %v683
    %v685 = vpop.f32.mrf.mxu0
    %v686 = vpop.f32.mrf.mxu0
    %v687 = vpop.f32.mrf.mxu0
    %688 = vdwg.mxu0
    %v689 = vadd.f32 %v641, %v684
    %v690 = vxor.u32 %v689, 2147483648
    %v691 = vmul.f32 %v690, 1.442695
    %v692 = vpow.pop %v691
    %v693 = vadd.f32 %v692, 1.0
    %v694 = vrcp.pop %v693
    %v695 = vmul.f32 1.0, %v694
    %v696 = vtanh.pop %v689
    %v697 = vsel %vm237, %v695, %v696
    %v698 = vmul.f32 %v697, %v631
    %700 = vrot.lane.b32.xlu0 %v697, 32
    %v701 = vpop.permute.xlu0 %700
    %v703 = vmul.f32 %v697, %v701
    %705 = vrot.lane.b32.xlu0 %v703, 32
    %v706 = vpop.permute.xlu0 %705
    %v708 = vadd.f32 %v698, %v706
    %v709 = vtanh.pop %v708
    %711 = vrot.lane.b32.xlu0 %v709, 32
    %v712 = vpop.permute.xlu0 %711
    %v714 = vmul.f32 %v697, %v712
    %s715 = scalar_lea.vmem [#allocation2], 24
    %v716 = vld [vmem:[%s715] sm:$0xf]
    %v717 = vunpack.c.l.bf16 %v716
    %v718 = vadd.f32 %v717, %v233
    %v719 = vpack.c.bf16 %v714, %v714
    %721 = vrot.lane.b32.xlu0 %v719, 64
    %v722 = vpop.permute.xlu0 %721
    %v724 = vsel %vm256, %v722, 0
    %726 = vmatprep.subr.bf16.mxu0 0
    %727 = vmatpush1.bf16.msra.mxu0 0
    %728 = vmatprep.subr.bf16.mxu0 0
    %729 = vmatpush1.bf16.msra.mxu0 0
    %730 = vmatprep.subr.bf16.mxu0 0
    %731 = vmatpush1.bf16.msra.mxu0 0
    %732 = vmatprep.subr.bf16.mxu0 0
    %733 = vmatpush1.bf16.msra.mxu0 0
    %734 = vmatprep.subr.bf16.mxu0 0
    %735 = vmatpush1.bf16.msra.mxu0 0
    %736 = vmatprep.subr.bf16.mxu0 0
    %737 = vmatpush1.bf16.msra.mxu0 0
    %738 = vmatprep.subr.bf16.mxu0 0
    %739 = vmatpush1.bf16.msra.mxu0 %v253
    %740 = vmatprep.subr.bf16.mxu0 0
    %741 = vmatpush1.bf16.msra.mxu0 %v252
    %742 = vmatprep.subr.bf16.mxu0 0
    %743 = vmatpush2.bf16.msra.mxu0 0
    %744 = vmatprep.subr.bf16.mxu0 0
    %745 = vmatpush2.bf16.msra.mxu0 0
    %746 = vmatprep.subr.bf16.mxu0 0
    %747 = vmatpush2.bf16.msra.mxu0 0
    %748 = vmatprep.subr.bf16.mxu0 0
    %749 = vmatpush2.bf16.msra.mxu0 0
    %750 = vmatprep.subr.bf16.mxu0 0
    %751 = vmatpush2.bf16.msra.mxu0 0
    %752 = vmatprep.subr.bf16.mxu0 0
    %753 = vmatpush2.bf16.msra.mxu0 0
    %754 = vmatprep.subr.bf16.mxu0 0
    %755 = vmatpush2.bf16.msra.mxu0 0
    %756 = vmatprep.subr.bf16.mxu0 0
    %757 = vmatpush2.bf16.msra.mxu0 0
    %758 = vmatprep.mubr.bf16.mxu0 0
    %759 = vmatmul.mubr.bf16.gmra.mxu0 %v724
    %v760 = vpop.f32.mrf.mxu0
    %v761 = vadd.f32 0.0, %v760
    %v762 = vpop.f32.mrf.mxu0
    %v763 = vpop.f32.mrf.mxu0
    %v764 = vpop.f32.mrf.mxu0
    %765 = vdwg.mxu0
    %v766 = vadd.f32 %v718, %v761
    %v767 = vxor.u32 %v766, 2147483648
    %v768 = vmul.f32 %v767, 1.442695
    %v769 = vpow.pop %v768
    %v770 = vadd.f32 %v769, 1.0
    %v771 = vrcp.pop %v770
    %v772 = vmul.f32 1.0, %v771
    %v773 = vtanh.pop %v766
    %v774 = vsel %vm237, %v772, %v773
    %v775 = vmul.f32 %v774, %v708
    %777 = vrot.lane.b32.xlu0 %v774, 32
    %v778 = vpop.permute.xlu0 %777
    %v780 = vmul.f32 %v774, %v778
    %782 = vrot.lane.b32.xlu0 %v780, 32
    %v783 = vpop.permute.xlu0 %782
    %v785 = vadd.f32 %v775, %v783
    %v786 = vtanh.pop %v785
    %788 = vrot.lane.b32.xlu0 %v786, 32
    %v789 = vpop.permute.xlu0 %788
    %v791 = vmul.f32 %v774, %v789
    %s792 = scalar_lea.vmem [#allocation2], 28
    %v793 = vld [vmem:[%s792] sm:$0xf]
    %v794 = vunpack.c.l.bf16 %v793
    %v795 = vadd.f32 %v794, %v233
    %v796 = vpack.c.bf16 %v791, %v791
    %798 = vrot.lane.b32.xlu0 %v796, 64
    %v799 = vpop.permute.xlu0 %798
    %v801 = vsel %vm256, %v799, 0
    %803 = vmatprep.subr.bf16.mxu0 0
    %804 = vmatpush1.bf16.msra.mxu0 0
    %805 = vmatprep.subr.bf16.mxu0 0
    %806 = vmatpush1.bf16.msra.mxu0 0
    %807 = vmatprep.subr.bf16.mxu0 0
    %808 = vmatpush1.bf16.msra.mxu0 0
    %809 = vmatprep.subr.bf16.mxu0 0
    %810 = vmatpush1.bf16.msra.mxu0 0
    %811 = vmatprep.subr.bf16.mxu0 0
    %812 = vmatpush1.bf16.msra.mxu0 0
    %813 = vmatprep.subr.bf16.mxu0 0
    %814 = vmatpush1.bf16.msra.mxu0 0
    %815 = vmatprep.subr.bf16.mxu0 0
    %816 = vmatpush1.bf16.msra.mxu0 %v253
    %817 = vmatprep.subr.bf16.mxu0 0
    %818 = vmatpush1.bf16.msra.mxu0 %v252
    %819 = vmatprep.subr.bf16.mxu0 0
    %820 = vmatpush2.bf16.msra.mxu0 0
    %821 = vmatprep.subr.bf16.mxu0 0
    %822 = vmatpush2.bf16.msra.mxu0 0
    %823 = vmatprep.subr.bf16.mxu0 0
    %824 = vmatpush2.bf16.msra.mxu0 0
    %825 = vmatprep.subr.bf16.mxu0 0
    %826 = vmatpush2.bf16.msra.mxu0 0
    %827 = vmatprep.subr.bf16.mxu0 0
    %828 = vmatpush2.bf16.msra.mxu0 0
    %829 = vmatprep.subr.bf16.mxu0 0
    %830 = vmatpush2.bf16.msra.mxu0 0
    %831 = vmatprep.subr.bf16.mxu0 0
    %832 = vmatpush2.bf16.msra.mxu0 0
    %833 = vmatprep.subr.bf16.mxu0 0
    %834 = vmatpush2.bf16.msra.mxu0 0
    %835 = vmatprep.mubr.bf16.mxu0 0
    %836 = vmatmul.mubr.bf16.gmra.mxu0 %v801
    %v837 = vpop.f32.mrf.mxu0
    %v838 = vadd.f32 0.0, %v837
    %v839 = vpop.f32.mrf.mxu0
    %v840 = vpop.f32.mrf.mxu0
    %v841 = vpop.f32.mrf.mxu0
    %842 = vdwg.mxu0
    %v843 = vadd.f32 %v795, %v838
    %v844 = vxor.u32 %v843, 2147483648
    %v845 = vmul.f32 %v844, 1.442695
    %v846 = vpow.pop %v845
    %v847 = vadd.f32 %v846, 1.0
    %v848 = vrcp.pop %v847
    %v849 = vmul.f32 1.0, %v848
    %v850 = vtanh.pop %v843
    %v851 = vsel %vm237, %v849, %v850
    %v852 = vmul.f32 %v851, %v785
    %854 = vrot.lane.b32.xlu0 %v851, 32
    %v855 = vpop.permute.xlu0 %854
    %v857 = vmul.f32 %v851, %v855
    %859 = vrot.lane.b32.xlu0 %v857, 32
    %v860 = vpop.permute.xlu0 %859
    %v862 = vadd.f32 %v852, %v860
    %v863 = vtanh.pop %v862
    %865 = vrot.lane.b32.xlu0 %v863, 32
    %v866 = vpop.permute.xlu0 %865
    %v868 = vmul.f32 %v851, %v866
    %870 = vrot.lane.b32.xlu0 %v868, 64
    %v871 = vpop.permute.xlu0 %870
    %873 = vst.msk [vmem:[#allocation3] sm:$0xff] %vm256, %v871
    %875 = vrot.lane.b32.xlu0 %v862, 96
    %v876 = vpop.permute.xlu0 %875
    %878 = vst.msk [vmem:[#allocation4] sm:$0xff] %vm256, %v876
    // Predicated region
    $region34: #{tpu_custom_call.1} parent=1 // pred_check
      %p879 = pneg %p63
    $region35: #{tpu_custom_call.1} parent=1 // pred_check_branch
      %881 = sbr.rel (%p879) target = $region37
    $region36: #{tpu_custom_call.1} parent=1 // pred_region
      %882 = vst.msk [vmem:[#allocation11] sm:$0xff] %vm256, %v871
      %883 = vst.msk [vmem:[#allocation12] sm:$0xff] %vm256, %v876
    $region37: #{tpu_custom_call.1} parent=1 // pred_fallthru
      _
    // Predicated region
    $region38: #{tpu_custom_call.1} parent=1 // pred_check
      _
    $region39: #{tpu_custom_call.1} parent=1 // pred_check_branch
      %885 = sbr.rel (0) target = $region41
    $region40: #{tpu_custom_call.1} parent=1 // pred_region
      %s887 = ssub.s32 128, 128
      %888 = vsyncadd [#allocation7], %s887
      %s890 = sshll.u32 [#allocation11], 4
      %s891 = int_to_ptr.vmem [resolvable:$true] %s890
      %893 = dma.vmem_to_hbm [thread:$0]  %s891, 128, %s4, [#allocation7]
    $region41: #{tpu_custom_call.1} parent=1 // pred_fallthru
      _
    // Predicated region
    $region42: #{tpu_custom_call.1} parent=1 // pred_check
      _
    $region43: #{tpu_custom_call.1} parent=1 // pred_check_branch
      %895 = sbr.rel (0) target = $region45
    $region44: #{tpu_custom_call.1} parent=1 // pred_region
      %s897 = ssub.s32 128, 128
      %898 = vsyncadd [#allocation13], %s897
      %s900 = sshll.u32 [#allocation12], 4
      %s901 = int_to_ptr.vmem [resolvable:$true] %s900
      %903 = dma.vmem_to_hbm [thread:$0]  %s901, 128, %s5, [#allocation13]
    $region45: #{tpu_custom_call.1} parent=1 // pred_fallthru
      _
    // Predicated region
    $region46: #{tpu_custom_call.1} parent=1 // pred_check
      _
    $region47: #{tpu_custom_call.1} parent=1 // pred_check_branch
      %905 = sbr.rel (0) target = $region49
    $region48: #{tpu_custom_call.1} parent=1 // pred_region
      %906 = dma.done [#allocation7], 128
    $region49: #{tpu_custom_call.1} parent=1 // pred_fallthru
      _
    // Predicated region
    $region50: #{tpu_custom_call.1} parent=1 // pred_check
      _
    $region51: #{tpu_custom_call.1} parent=1 // pred_check_branch
      %908 = sbr.rel (0) target = $region53
    $region52: #{tpu_custom_call.1} parent=1 // pred_region
      %909 = dma.done [#allocation13], 128
    $region53: #{tpu_custom_call.1} parent=1 // pred_fallthru
      _
    %910 = vsyncpa [#allocation6], 1
    %911 = vsyncpa [#allocation9], 1
    %912 = vsyncpa [#allocation7], 1
    %913 = vsyncpa [#allocation13], 1

</llo_original>
